<compile_context>
chip_gen: v6e
topology: v6e:2x2x1
jax: 0.10.0
libtpu: 0.0.40
codegen_flags: <defaults>
</compile_context>

<pallas_src>
import math

import jax
import jax.numpy as jnp
from jax.experimental import pallas as pl
from jax.experimental.pallas import tpu as pltpu


def _lcm(a, b):
    return a * b // math.gcd(a, b)


def _round_up(a, b):
    return -(-a // b) * b


def _make_block_kernel(n_layers, K, W, TB, pool_size, out_w):
    """Whole BasicCondConvBlock, fused, for one batch tile of TB samples.

    Activation layout: (channels, W*TB), flat lane index n = w*TB + t
    (w = width position, t = sample in the tile). Conv taps and pooling windows
    are lane slices at offsets k*TB / (wo*pool+j)*TB; the zero halo lives in a
    persistent padded VMEM scratch so no per-sample / cross-sample bleed occurs.
    """
    halo = (K - 1) // 2  # padding = (K-1)//2, as in _cond_conv1d_3 (k=3, pad=1)

    def kernel(x_ref, *rest):
        o_ref, xp_ref = rest[-2], rest[-1]
        lrefs = rest[:-2]
        sdt = xp_ref.dtype                       # MXU-operand / storage dtype

        # Zero the halo columns once per grid step; interior writes below never
        # touch them, so they stay zero for every layer.
        if halo > 0:
            z = jnp.zeros((xp_ref.shape[0], halo * TB), sdt)
            xp_ref[:, 0:halo * TB] = z
            xp_ref[:, (halo + W) * TB:(W + 2 * halo) * TB] = z

        act = x_ref[...].astype(sdt)             # (C_in, W*TB)

        for l in range(n_layers):
            wbig_ref, fcw_ref, fcb_ref, bsc_ref, shift_ref = lrefs[5 * l:5 * l + 5]
            n_exp, c_in = fcw_ref.shape
            c_out = wbig_ref.shape[0] // n_exp

            # --- routing: sigmoid(Linear(mean over W)) per sample -> (E, TB) --
            # log-depth tree over the W lane-chunks (breaks the serial VPU chain)
            parts = [act[:, w * TB:(w + 1) * TB].astype(jnp.float32)
                     for w in range(W)]
            while len(parts) > 1:
                nxt = [parts[i] + parts[i + 1] for i in range(0, len(parts) - 1, 2)]
                if len(parts) % 2:
                    nxt.append(parts[-1])
                parts = nxt
            pooled = parts[0] * (1.0 / W)                      # (C_in, TB)
            routing = jax.nn.sigmoid(
                jnp.dot(fcw_ref[...], pooled,
                        preferred_element_type=jnp.float32) + fcb_ref[...])
            # tile routing over W ONCE per layer (shared by every expert)
            r_tiled = (jnp.concatenate([routing] * W, axis=1)
                       if W > 1 else routing)                  # (E, W*TB)

            # --- write activation into the persistent padded scratch ---------
            xp_ref[0:c_in, halo * TB:(halo + W) * TB] = act

            # --- im2col patches = K lane slices of the padded scratch --------
            rows_k = [xp_ref[0:c_in, k * TB:(k + W) * TB] for k in range(K)]
            patches = jnp.concatenate(rows_k, axis=0) if K > 1 else rows_k[0]

            # --- ALL experts in one MXU call (BN scale pre-folded), f32 acc --
            conv_all = jnp.dot(wbig_ref[...], patches,
                               preferred_element_type=jnp.float32)  # (E*C_out, W*TB)

            # --- per-sample expert-output mixing + bias + BN shift -----------
            y = None
            for e in range(n_exp):
                blk = conv_all[e * c_out:(e + 1) * c_out, :] + bsc_ref[:, e:e + 1]
                term = r_tiled[e:e + 1, :] * blk
                y = term if y is None else y + term
            y = y + shift_ref[...]                             # eval-BN shift
            y = jnp.where(y > 0.0, y, 0.1 * y)                 # LeakyReLU(0.1)
            act = y.astype(sdt)

        # --- fused max_pool1d: direct per-window stores (no concat copy) -----
        if pool_size > 1:
            for wo in range(out_w):
                base = wo * pool_size * TB
                seg = act[:, base:base + TB]
                for j in range(1, pool_size):
                    seg = jnp.maximum(seg, act[:, base + j * TB:base + (j + 1) * TB])
                o_ref[:, wo * TB:(wo + 1) * TB] = seg.astype(o_ref.dtype)
        else:
            o_ref[...] = act.astype(o_ref.dtype)

    return kernel


def basic_cond_conv_block(x, params, pool_size=2, dropout=0.5,
                          compute_dtype=jnp.float32):
    """Inference-mode forward of BasicCondConvBlock in a single fused pallas_call.

    compute_dtype=jnp.bfloat16 halves DMA/VMEM and runs the MXU at native rate
    on v6e/v7x (routing / mixing / BN / LeakyReLU stay f32); default f32 matches
    the PyTorch f32 reference bit-for-bit within 1e-4.
    """
    B, c0, W = x.shape
    E, _, _, K = params[0]["weight"].shape
    assert K % 2 == 1, "kernel_size must be odd (padding = (K-1)//2)"
    for p in params:
        assert p["weight"].shape[3] == K and p["weight"].shape[0] == E
    out_w = W // pool_size if pool_size > 1 else W   # PyTorch floor behavior
    assert out_w >= 1
    halo = (K - 1) // 2
    eps = 1e-5

    chans = [params[0]["weight"].shape[2]] + [p["weight"].shape[1] for p in params]
    c_last = chans[-1]
    cmax_in = max(chans[:-1])
    cmax_out = max(chans[1:])

    # ---- fold eval-BN scale into the expert weights / bias -------------------
    #   bn(conv) = sum_e r[b,e] * ((scale*W_e) (*) x_b + scale*b_e) + shift
    layer_inputs = []
    for p in params:
        n_exp, c_out, c_in, k_l = p["weight"].shape
        scale = p["bn_gamma"] / jnp.sqrt(p["bn_var"] + eps)               # (C_out,)
        shift = (p["bn_beta"] - p["bn_mean"] * scale).reshape(c_out, 1)
        wm = jnp.transpose(p["weight"], (0, 1, 3, 2)).reshape(n_exp, c_out,
                                                              k_l * c_in)
        wm = wm * scale[None, :, None]
        wbig = wm.reshape(n_exp * c_out, k_l * c_in).astype(compute_dtype)
        bsc = (p["bias"] * scale[None, :]).T.astype(jnp.float32)          # (C_out, E)
        layer_inputs += [wbig,                                            # (E*C_out, K*C_in)
                         p["fc_w"].astype(jnp.float32),                   # (E, C_in)
                         p["fc_b"].reshape(n_exp, 1).astype(jnp.float32), # (E, 1)
                         bsc,
                         shift.astype(jnp.float32)]                       # (C_out, 1)

    # ---- batch-tile size: lane density first, then VMEM budget --------------
    lane = 128
    align = _lcm(lane // math.gcd(lane, W), lane // math.gcd(lane, out_w))
    if B >= lane:
        # vreg-aligned k*TB / pooling-slice offsets when the batch allows it
        align = _lcm(align, lane)

    bpe = jnp.dtype(compute_dtype).itemsize
    obe = jnp.dtype(x.dtype).itemsize
    per_tb = (bpe * (2 * c0 * W                          # double-buffered input block
                     + cmax_in * (W + 2 * halo)          # padded scratch
                     + K * cmax_in * W)                  # im2col patches temp
              + 4 * (E * cmax_out * W                    # stacked expert conv output (f32)
                     + 2 * cmax_out * W)                 # mixing / LeakyReLU temps (f32)
              + 2 * obe * c_last * out_w)                # double-buffered output block
    budget = 20 * 2 ** 20                                # safe even for v7x (64 MiB VMEM)
    tb_cap = max(align, (budget // per_tb) // align * align)
    tb_cap = min(tb_cap, max(align, _round_up(2048, align)))  # keep >1 grid step for big
    TB = max(align, min(_round_up(B, align), tb_cap))         # batches (v7x megacore)
    num_tiles = -(-B // TB)
    Bp = num_tiles * TB

    weights_bytes = sum(int(a.size) * a.dtype.itemsize for a in layer_inputs)
    est_vmem = per_tb * TB + 2 * weights_bytes
    vmem_limit = int(min(100 * 2 ** 20, max(32 * 2 ** 20, 2 * est_vmem)))

    # ---- lay the input out lane-dense: (tiles, C, W*TB), flat = w*TB + t -----
    # TODO(synk): if this block is chained, keep data in this tiled layout
    # between calls to avoid the extra HBM pass of this reshape/transpose.
    xin = x.astype(compute_dtype)
    if Bp != B:
        xin = jnp.pad(xin, ((0, Bp - B), (0, 0), (0, 0)))
    xin = xin.reshape(num_tiles, TB, c0, W).transpose(0, 2, 3, 1)
    xin = xin.reshape(num_tiles, c0, W * TB)

    kernel = _make_block_kernel(len(params), K, W, TB, pool_size, out_w)

    def _const_spec(a):  # full-array block, same for every grid step
        nd = a.ndim
        return pl.BlockSpec(a.shape, lambda t, nd=nd: (0,) * nd)

    in_specs = [pl.BlockSpec((pl.Squeezed(), c0, W * TB), lambda t: (t, 0, 0))]
    in_specs += [_const_spec(a) for a in layer_inputs]

    scratch_rows = _round_up(cmax_in, 8)
    xp_scratch = pltpu.VMEM((scratch_rows, (W + 2 * halo) * TB), compute_dtype)

    out = pl.pallas_call(
        kernel,
        out_shape=jax.ShapeDtypeStruct((num_tiles, c_last, out_w * TB), x.dtype),
        grid_spec=pltpu.PrefetchScalarGridSpec(
            num_scalar_prefetch=0,
            grid=(num_tiles,),
            in_specs=in_specs,
            out_specs=pl.BlockSpec((pl.Squeezed(), c_last, out_w * TB),
                                   lambda t: (t, 0, 0)),
            scratch_shapes=[xp_scratch]),
        compiler_params=pltpu.CompilerParams(
            dimension_semantics=("parallel",),
            vmem_limit_bytes=vmem_limit),
    )(xin, *layer_inputs)

    # (tiles, C, out_w*TB) -> (B, C, out_w)
    out = out.reshape(num_tiles, c_last, out_w, TB).transpose(0, 3, 1, 2)
    out = out.reshape(Bp, c_last, out_w)[:B]
    # TODO(synk): dropout is identity at inference; training-mode dropout and
    # batch-statistic BatchNorm are not implemented.
    return out


def init_params(key, channel_list, kernel_size=3, num_experts=1):
    """Deterministic synthetic parameters matching CondConv1d/BatchNorm1d shapes."""
    params = []
    for i in range(len(channel_list) - 1):
        c_in, c_out = channel_list[i], channel_list[i + 1]
        key, kw, kb, kfw, kfb, kg, kbeta, km, kv = jax.random.split(key, 9)
        fan_in = c_in * kernel_size
        gain = math.sqrt(2.0 / (1.0 + 5.0))            # kaiming_uniform_(a=sqrt(5))
        bound_w = gain * math.sqrt(3.0 / fan_in)
        weight = jax.random.uniform(kw, (num_experts, c_out, c_in, kernel_size),
                                    jnp.float32, -bound_w, bound_w)
        bound_b = 1.0 / math.sqrt(fan_in)
        bias = jax.random.uniform(kb, (num_experts, c_out), jnp.float32,
                                  -bound_b, bound_b)
        fc_bound = 1.0 / math.sqrt(c_in)
        fc_w = jax.random.uniform(kfw, (num_experts, c_in), jnp.float32,
                                  -fc_bound, fc_bound)
        fc_b = jax.random.uniform(kfb, (num_experts,), jnp.float32,
                                  -fc_bound, fc_bound)
        params.append(dict(
            weight=weight, bias=bias, fc_w=fc_w, fc_b=fc_b,
            bn_gamma=1.0 + 0.1 * jax.random.normal(kg, (c_out,), jnp.float32),
            bn_beta=0.1 * jax.random.normal(kbeta, (c_out,), jnp.float32),
            bn_mean=0.1 * jax.random.normal(km, (c_out,), jnp.float32),
            bn_var=jax.random.uniform(kv, (c_out,), jnp.float32, 0.5, 1.5),
        ))
    return params


# --------------------------- pure-JAX reference ------------------------------
def _ref_forward(x, params, pool_size):
    eps = 1e-5
    for layer in params:
        B, C_in, W = x.shape
        E, C_out, _, K = layer["weight"].shape
        pooled = jnp.mean(x, axis=-1)
        routing = jax.nn.sigmoid(pooled @ layer["fc_w"].T + layer["fc_b"])
        cw = (routing @ layer["weight"].reshape(E, -1)).reshape(B, C_out, C_in, K)
        cb = routing @ layer["bias"]
        xp = jnp.pad(x, ((0, 0), (0, 0), (1, 1)))
        patches = jnp.stack([xp[:, :, k:k + W] for k in range(K)], axis=2)
        y = jnp.einsum("boik,bikt->bot", cw, patches) + cb[:, :, None]
        scale = layer["bn_gamma"] / jnp.sqrt(layer["bn_var"] + eps)
        y = (y - layer["bn_mean"][None, :, None]) * scale[None, :, None] \
            + layer["bn_beta"][None, :, None]
        x = jnp.where(y > 0, y, 0.1 * y)
    if pool_size > 1:
        B, C, W = x.shape
        W_out = W // pool_size
        x = x[:, :, :W_out * pool_size].reshape(B, C, W_out, pool_size).max(-1)
    return x


if __name__ == "__main__":
    key = jax.random.PRNGKey(0)
    channel_list = [4, 8, 8]
    B, W = 2, 16
    pool_size = 2

    kx, kp = jax.random.split(key)
    x = jax.random.normal(kx, (B, channel_list[0], W), jnp.float32)
    params = init_params(kp, channel_list)

    out = basic_cond_conv_block(x, params, pool_size=pool_size, dropout=0.5)
    out = jax.block_until_ready(out)

    ref = _ref_forward(x, params, pool_size)
    assert out.shape == (B, channel_list[-1], W // pool_size), out.shape
    assert jnp.allclose(out, ref, atol=1e-4, rtol=1e-4), \
        float(jnp.max(jnp.abs(out - ref)))
    print("KERNEL_OK")
</pallas_src>

<mosaic_0001>
module attributes {stable_mosaic.version = 11 : i64} {
  func.func @kernel(%arg0: i32, %arg1: memref<1x4x256xf32, #tpu.memory_space<vmem>>, %arg2: memref<8x12xf32, #tpu.memory_space<vmem>>, %arg3: memref<1x4xf32, #tpu.memory_space<vmem>>, %arg4: memref<1x1xf32, #tpu.memory_space<vmem>>, %arg5: memref<8x1xf32, #tpu.memory_space<vmem>>, %arg6: memref<8x1xf32, #tpu.memory_space<vmem>>, %arg7: memref<8x24xf32, #tpu.memory_space<vmem>>, %arg8: memref<1x8xf32, #tpu.memory_space<vmem>>, %arg9: memref<1x1xf32, #tpu.memory_space<vmem>>, %arg10: memref<8x1xf32, #tpu.memory_space<vmem>>, %arg11: memref<8x1xf32, #tpu.memory_space<vmem>>, %arg12: memref<1x8x128xf32, #tpu.memory_space<vmem>>, %arg13: memref<8x288xf32, #tpu.memory_space<vmem>>) attributes {dimension_semantics = [#tpu.dimension_semantics<parallel>], iteration_bounds = array<i64: 1>, scalar_prefetch = 0 : i64, scratch_operands = 1 : i64, tpu.core_type = #tpu.core_type<tc>, window_params = [{transform_indices = @transform_0, window_bounds = array<i64: 1, 4, 256>}, {pipeline_mode = #tpu.pipeline_mode<synchronous>, transform_indices = @transform_1, window_bounds = array<i64: 8, 12>}, {pipeline_mode = #tpu.pipeline_mode<synchronous>, transform_indices = @transform_2, window_bounds = array<i64: 1, 4>}, {pipeline_mode = #tpu.pipeline_mode<synchronous>, transform_indices = @transform_3, window_bounds = array<i64: 1, 1>}, {pipeline_mode = #tpu.pipeline_mode<synchronous>, transform_indices = @transform_4, window_bounds = array<i64: 8, 1>}, {pipeline_mode = #tpu.pipeline_mode<synchronous>, transform_indices = @transform_5, window_bounds = array<i64: 8, 1>}, {pipeline_mode = #tpu.pipeline_mode<synchronous>, transform_indices = @transform_6, window_bounds = array<i64: 8, 24>}, {pipeline_mode = #tpu.pipeline_mode<synchronous>, transform_indices = @transform_7, window_bounds = array<i64: 1, 8>}, {pipeline_mode = #tpu.pipeline_mode<synchronous>, transform_indices = @transform_8, window_bounds = array<i64: 1, 1>}, {pipeline_mode = #tpu.pipeline_mode<synchronous>, transform_indices = @transform_9, window_bounds = array<i64: 8, 1>}, {pipeline_mode = #tpu.pipeline_mode<synchronous>, transform_indices = @transform_10, window_bounds = array<i64: 8, 1>}, {transform_indices = @transform_11, window_bounds = array<i64: 1, 8, 128>}]} {
    %cst = arith.constant 0.000000e+00 : f32
    %0 = vector.broadcast %cst : f32 to vector<8x16xf32>
    %c0 = arith.constant 0 : index
    %c0_0 = arith.constant 0 : index
    %1 = vector.load %arg13[%c0, %c0_0] : memref<8x288xf32, #tpu.memory_space<vmem>>, vector<8x16xf32>
    tpu.vector_store %arg13[%c0, %c0_0], %0 {strides = array<i32>} : memref<8x288xf32, #tpu.memory_space<vmem>>, vector<8x16xf32>,
    %c0_1 = arith.constant 0 : index
    %c272 = arith.constant 272 : index
    %2 = vector.load %arg13[%c0_1, %c272] : memref<8x288xf32, #tpu.memory_space<vmem>>, vector<8x16xf32>
    tpu.vector_store %arg13[%c0_1, %c272], %0 {strides = array<i32>} : memref<8x288xf32, #tpu.memory_space<vmem>>, vector<8x16xf32>,
    %c0_2 = arith.constant 0 : index
    %c0_3 = arith.constant 0 : index
    %c0_4 = arith.constant 0 : index
    %3 = vector.load %arg1[%c0_2, %c0_3, %c0_4] : memref<1x4x256xf32, #tpu.memory_space<vmem>>, vector<1x4x256xf32>
    %4 = vector.shape_cast %3 : vector<1x4x256xf32> to vector<4x256xf32>
    %5 = vector.extract_strided_slice %4 {offsets = [0, 0], sizes = [4, 16], strides = [1, 1]} : vector<4x256xf32> to vector<4x16xf32>
    %6 = vector.extract_strided_slice %4 {offsets = [0, 16], sizes = [4, 16], strides = [1, 1]} : vector<4x256xf32> to vector<4x16xf32>
    %7 = vector.extract_strided_slice %4 {offsets = [0, 32], sizes = [4, 16], strides = [1, 1]} : vector<4x256xf32> to vector<4x16xf32>
    %8 = vector.extract_strided_slice %4 {offsets = [0, 48], sizes = [4, 16], strides = [1, 1]} : vector<4x256xf32> to vector<4x16xf32>
    %9 = vector.extract_strided_slice %4 {offsets = [0, 64], sizes = [4, 16], strides = [1, 1]} : vector<4x256xf32> to vector<4x16xf32>
    %10 = vector.extract_strided_slice %4 {offsets = [0, 80], sizes = [4, 16], strides = [1, 1]} : vector<4x256xf32> to vector<4x16xf32>
    %11 = vector.extract_strided_slice %4 {offsets = [0, 96], sizes = [4, 16], strides = [1, 1]} : vector<4x256xf32> to vector<4x16xf32>
    %12 = vector.extract_strided_slice %4 {offsets = [0, 112], sizes = [4, 16], strides = [1, 1]} : vector<4x256xf32> to vector<4x16xf32>
    %13 = vector.extract_strided_slice %4 {offsets = [0, 128], sizes = [4, 16], strides = [1, 1]} : vector<4x256xf32> to vector<4x16xf32>
    %14 = vector.extract_strided_slice %4 {offsets = [0, 144], sizes = [4, 16], strides = [1, 1]} : vector<4x256xf32> to vector<4x16xf32>
    %15 = vector.extract_strided_slice %4 {offsets = [0, 160], sizes = [4, 16], strides = [1, 1]} : vector<4x256xf32> to vector<4x16xf32>
    %16 = vector.extract_strided_slice %4 {offsets = [0, 176], sizes = [4, 16], strides = [1, 1]} : vector<4x256xf32> to vector<4x16xf32>
    %17 = vector.extract_strided_slice %4 {offsets = [0, 192], sizes = [4, 16], strides = [1, 1]} : vector<4x256xf32> to vector<4x16xf32>
    %18 = vector.extract_strided_slice %4 {offsets = [0, 208], sizes = [4, 16], strides = [1, 1]} : vector<4x256xf32> to vector<4x16xf32>
    %19 = vector.extract_strided_slice %4 {offsets = [0, 224], sizes = [4, 16], strides = [1, 1]} : vector<4x256xf32> to vector<4x16xf32>
    %20 = vector.extract_strided_slice %4 {offsets = [0, 240], sizes = [4, 16], strides = [1, 1]} : vector<4x256xf32> to vector<4x16xf32>
    %21 = arith.addf %5, %6 : vector<4x16xf32>
    %22 = arith.addf %7, %8 : vector<4x16xf32>
    %23 = arith.addf %9, %10 : vector<4x16xf32>
    %24 = arith.addf %11, %12 : vector<4x16xf32>
    %25 = arith.addf %13, %14 : vector<4x16xf32>
    %26 = arith.addf %15, %16 : vector<4x16xf32>
    %27 = arith.addf %17, %18 : vector<4x16xf32>
    %28 = arith.addf %19, %20 : vector<4x16xf32>
    %29 = arith.addf %21, %22 : vector<4x16xf32>
    %30 = arith.addf %23, %24 : vector<4x16xf32>
    %31 = arith.addf %25, %26 : vector<4x16xf32>
    %32 = arith.addf %27, %28 : vector<4x16xf32>
    %33 = arith.addf %29, %30 : vector<4x16xf32>
    %34 = arith.addf %31, %32 : vector<4x16xf32>
    %35 = arith.addf %33, %34 : vector<4x16xf32>
    %cst_5 = arith.constant 6.250000e-02 : f32
    %36 = vector.broadcast %cst_5 : f32 to vector<4x16xf32>
    %37 = arith.mulf %35, %36 : vector<4x16xf32>
    %c0_6 = arith.constant 0 : index
    %c0_7 = arith.constant 0 : index
    %38 = vector.load %arg3[%c0_6, %c0_7] : memref<1x4xf32, #tpu.memory_space<vmem>>, vector<1x4xf32>
    %cst_8 = arith.constant dense<0.000000e+00> : vector<1x16xf32>
    %39 = tpu.matmul %38, %37, %cst_8 {dimension_numbers = #tpu.dot_dimension_numbers<[1], [0], [0], [1], [0, 0, 1, 1], [], []>} : vector<1x4xf32>, vector<4x16xf32>, vector<1x16xf32> -> vector<1x16xf32>
    %c0_9 = arith.constant 0 : index
    %c0_10 = arith.constant 0 : index
    %40 = vector.load %arg4[%c0_9, %c0_10] : memref<1x1xf32, #tpu.memory_space<vmem>>, vector<1x1xf32>
    %41 = vector.broadcast %40 : vector<1x1xf32> to vector<1x16xf32>
    %42 = arith.addf %39, %41 : vector<1x16xf32>
    %43 = arith.negf %42 : vector<1x16xf32>
    %44 = math.exp %43 : vector<1x16xf32>
    %cst_11 = arith.constant 1.000000e+00 : f32
    %45 = vector.broadcast %cst_11 : f32 to vector<1x16xf32>
    %46 = arith.addf %45, %44 : vector<1x16xf32>
    %47 = arith.divf %45, %46 : vector<1x16xf32>
    %48 = tpu.concatenate %47, %47, %47, %47, %47, %47, %47, %47, %47, %47, %47, %47, %47, %47, %47, %47 in 1 : vector<1x16xf32>, vector<1x16xf32>, vector<1x16xf32>, vector<1x16xf32>, vector<1x16xf32>, vector<1x16xf32>, vector<1x16xf32>, vector<1x16xf32>, vector<1x16xf32>, vector<1x16xf32>, vector<1x16xf32>, vector<1x16xf32>, vector<1x16xf32>, vector<1x16xf32>, vector<1x16xf32>, vector<1x16xf32> -> vector<1x256xf32>
    %c0_12 = arith.constant 0 : index
    %c16 = arith.constant 16 : index
    %49 = vector.load %arg13[%c0_12, %c16] : memref<8x288xf32, #tpu.memory_space<vmem>>, vector<4x256xf32>
    tpu.vector_store %arg13[%c0_12, %c16], %4 {strides = array<i32>} : memref<8x288xf32, #tpu.memory_space<vmem>>, vector<4x256xf32>,
    %c0_13 = arith.constant 0 : index
    %c0_14 = arith.constant 0 : index
    %50 = vector.load %arg13[%c0_13, %c0_14] : memref<8x288xf32, #tpu.memory_space<vmem>>, vector<4x256xf32>
    %c0_15 = arith.constant 0 : index
    %c16_16 = arith.constant 16 : index
    %51 = vector.load %arg13[%c0_15, %c16_16] : memref<8x288xf32, #tpu.memory_space<vmem>>, vector<4x256xf32>
    %c0_17 = arith.constant 0 : index
    %c32 = arith.constant 32 : index
    %52 = vector.load %arg13[%c0_17, %c32] : memref<8x288xf32, #tpu.memory_space<vmem>>, vector<4x256xf32>
    %53 = tpu.concatenate %50, %51, %52 in 0 : vector<4x256xf32>, vector<4x256xf32>, vector<4x256xf32> -> vector<12x256xf32>
    %c0_18 = arith.constant 0 : index
    %c0_19 = arith.constant 0 : index
    %54 = vector.load %arg2[%c0_18, %c0_19] : memref<8x12xf32, #tpu.memory_space<vmem>>, vector<8x12xf32>
    %cst_20 = arith.constant dense<0.000000e+00> : vector<8x256xf32>
    %55 = tpu.matmul %54, %53, %cst_20 {dimension_numbers = #tpu.dot_dimension_numbers<[1], [0], [0], [1], [0, 0, 1, 1], [], []>} : vector<8x12xf32>, vector<12x256xf32>, vector<8x256xf32> -> vector<8x256xf32>
    %c0_21 = arith.constant 0 : index
    %c0_22 = arith.constant 0 : index
    %56 = vector.load %arg5[%c0_21, %c0_22] : memref<8x1xf32, #tpu.memory_space<vmem>>, vector<8x1xf32>
    %57 = vector.broadcast %56 : vector<8x1xf32> to vector<8x256xf32>
    %58 = arith.addf %55, %57 : vector<8x256xf32>
    %59 = vector.broadcast %48 : vector<1x256xf32> to vector<8x256xf32>
    %60 = arith.mulf %59, %58 : vector<8x256xf32>
    %c0_23 = arith.constant 0 : index
    %c0_24 = arith.constant 0 : index
    %61 = vector.load %arg6[%c0_23, %c0_24] : memref<8x1xf32, #tpu.memory_space<vmem>>, vector<8x1xf32>
    %62 = vector.broadcast %61 : vector<8x1xf32> to vector<8x256xf32>
    %63 = arith.addf %60, %62 : vector<8x256xf32>
    %cst_25 = arith.constant 0.000000e+00 : f32
    %64 = vector.broadcast %cst_25 : f32 to vector<8x256xf32>
    %65 = arith.cmpf ogt, %63, %64 : vector<8x256xf32>
    %cst_26 = arith.constant 1.000000e-01 : f32
    %66 = vector.broadcast %cst_26 : f32 to vector<8x256xf32>
    %67 = arith.mulf %66, %63 : vector<8x256xf32>
    %68 = arith.select %65, %63, %67 : vector<8x256xi1>, vector<8x256xf32>
    %69 = vector.extract_strided_slice %68 {offsets = [0, 0], sizes = [8, 16], strides = [1, 1]} : vector<8x256xf32> to vector<8x16xf32>
    %70 = vector.extract_strided_slice %68 {offsets = [0, 16], sizes = [8, 16], strides = [1, 1]} : vector<8x256xf32> to vector<8x16xf32>
    %71 = vector.extract_strided_slice %68 {offsets = [0, 32], sizes = [8, 16], strides = [1, 1]} : vector<8x256xf32> to vector<8x16xf32>
    %72 = vector.extract_strided_slice %68 {offsets = [0, 48], sizes = [8, 16], strides = [1, 1]} : vector<8x256xf32> to vector<8x16xf32>
    %73 = vector.extract_strided_slice %68 {offsets = [0, 64], sizes = [8, 16], strides = [1, 1]} : vector<8x256xf32> to vector<8x16xf32>
    %74 = vector.extract_strided_slice %68 {offsets = [0, 80], sizes = [8, 16], strides = [1, 1]} : vector<8x256xf32> to vector<8x16xf32>
    %75 = vector.extract_strided_slice %68 {offsets = [0, 96], sizes = [8, 16], strides = [1, 1]} : vector<8x256xf32> to vector<8x16xf32>
    %76 = vector.extract_strided_slice %68 {offsets = [0, 112], sizes = [8, 16], strides = [1, 1]} : vector<8x256xf32> to vector<8x16xf32>
    %77 = vector.extract_strided_slice %68 {offsets = [0, 128], sizes = [8, 16], strides = [1, 1]} : vector<8x256xf32> to vector<8x16xf32>
    %78 = vector.extract_strided_slice %68 {offsets = [0, 144], sizes = [8, 16], strides = [1, 1]} : vector<8x256xf32> to vector<8x16xf32>
    %79 = vector.extract_strided_slice %68 {offsets = [0, 160], sizes = [8, 16], strides = [1, 1]} : vector<8x256xf32> to vector<8x16xf32>
    %80 = vector.extract_strided_slice %68 {offsets = [0, 176], sizes = [8, 16], strides = [1, 1]} : vector<8x256xf32> to vector<8x16xf32>
    %81 = vector.extract_strided_slice %68 {offsets = [0, 192], sizes = [8, 16], strides = [1, 1]} : vector<8x256xf32> to vector<8x16xf32>
    %82 = vector.extract_strided_slice %68 {offsets = [0, 208], sizes = [8, 16], strides = [1, 1]} : vector<8x256xf32> to vector<8x16xf32>
    %83 = vector.extract_strided_slice %68 {offsets = [0, 224], sizes = [8, 16], strides = [1, 1]} : vector<8x256xf32> to vector<8x16xf32>
    %84 = vector.extract_strided_slice %68 {offsets = [0, 240], sizes = [8, 16], strides = [1, 1]} : vector<8x256xf32> to vector<8x16xf32>
    %85 = arith.addf %69, %70 : vector<8x16xf32>
    %86 = arith.addf %71, %72 : vector<8x16xf32>
    %87 = arith.addf %73, %74 : vector<8x16xf32>
    %88 = arith.addf %75, %76 : vector<8x16xf32>
    %89 = arith.addf %77, %78 : vector<8x16xf32>
    %90 = arith.addf %79, %80 : vector<8x16xf32>
    %91 = arith.addf %81, %82 : vector<8x16xf32>
    %92 = arith.addf %83, %84 : vector<8x16xf32>
    %93 = arith.addf %85, %86 : vector<8x16xf32>
    %94 = arith.addf %87, %88 : vector<8x16xf32>
    %95 = arith.addf %89, %90 : vector<8x16xf32>
    %96 = arith.addf %91, %92 : vector<8x16xf32>
    %97 = arith.addf %93, %94 : vector<8x16xf32>
    %98 = arith.addf %95, %96 : vector<8x16xf32>
    %99 = arith.addf %97, %98 : vector<8x16xf32>
    %cst_27 = arith.constant 6.250000e-02 : f32
    %100 = vector.broadcast %cst_27 : f32 to vector<8x16xf32>
    %101 = arith.mulf %99, %100 : vector<8x16xf32>
    %c0_28 = arith.constant 0 : index
    %c0_29 = arith.constant 0 : index
    %102 = vector.load %arg8[%c0_28, %c0_29] : memref<1x8xf32, #tpu.memory_space<vmem>>, vector<1x8xf32>
    %cst_30 = arith.constant dense<0.000000e+00> : vector<1x16xf32>
    %103 = tpu.matmul %102, %101, %cst_30 {dimension_numbers = #tpu.dot_dimension_numbers<[1], [0], [0], [1], [0, 0, 1, 1], [], []>} : vector<1x8xf32>, vector<8x16xf32>, vector<1x16xf32> -> vector<1x16xf32>
    %c0_31 = arith.constant 0 : index
    %c0_32 = arith.constant 0 : index
    %104 = vector.load %arg9[%c0_31, %c0_32] : memref<1x1xf32, #tpu.memory_space<vmem>>, vector<1x1xf32>
    %105 = vector.broadcast %104 : vector<1x1xf32> to vector<1x16xf32>
    %106 = arith.addf %103, %105 : vector<1x16xf32>
    %107 = arith.negf %106 : vector<1x16xf32>
    %108 = math.exp %107 : vector<1x16xf32>
    %cst_33 = arith.constant 1.000000e+00 : f32
    %109 = vector.broadcast %cst_33 : f32 to vector<1x16xf32>
    %110 = arith.addf %109, %108 : vector<1x16xf32>
    %111 = arith.divf %109, %110 : vector<1x16xf32>
    %112 = tpu.concatenate %111, %111, %111, %111, %111, %111, %111, %111, %111, %111, %111, %111, %111, %111, %111, %111 in 1 : vector<1x16xf32>, vector<1x16xf32>, vector<1x16xf32>, vector<1x16xf32>, vector<1x16xf32>, vector<1x16xf32>, vector<1x16xf32>, vector<1x16xf32>, vector<1x16xf32>, vector<1x16xf32>, vector<1x16xf32>, vector<1x16xf32>, vector<1x16xf32>, vector<1x16xf32>, vector<1x16xf32>, vector<1x16xf32> -> vector<1x256xf32>
    %c0_34 = arith.constant 0 : index
    %c16_35 = arith.constant 16 : index
    %113 = vector.load %arg13[%c0_34, %c16_35] : memref<8x288xf32, #tpu.memory_space<vmem>>, vector<8x256xf32>
    tpu.vector_store %arg13[%c0_34, %c16_35], %68 {strides = array<i32>} : memref<8x288xf32, #tpu.memory_space<vmem>>, vector<8x256xf32>,
    %c0_36 = arith.constant 0 : index
    %c0_37 = arith.constant 0 : index
    %114 = vector.load %arg13[%c0_36, %c0_37] : memref<8x288xf32, #tpu.memory_space<vmem>>, vector<8x256xf32>
    %c0_38 = arith.constant 0 : index
    %c16_39 = arith.constant 16 : index
    %115 = vector.load %arg13[%c0_38, %c16_39] : memref<8x288xf32, #tpu.memory_space<vmem>>, vector<8x256xf32>
    %c0_40 = arith.constant 0 : index
    %c32_41 = arith.constant 32 : index
    %116 = vector.load %arg13[%c0_40, %c32_41] : memref<8x288xf32, #tpu.memory_space<vmem>>, vector<8x256xf32>
    %117 = tpu.concatenate %114, %115, %116 in 0 : vector<8x256xf32>, vector<8x256xf32>, vector<8x256xf32> -> vector<24x256xf32>
    %c0_42 = arith.constant 0 : index
    %c0_43 = arith.constant 0 : index
    %118 = vector.load %arg7[%c0_42, %c0_43] : memref<8x24xf32, #tpu.memory_space<vmem>>, vector<8x24xf32>
    %cst_44 = arith.constant dense<0.000000e+00> : vector<8x256xf32>
    %119 = tpu.matmul %118, %117, %cst_44 {dimension_numbers = #tpu.dot_dimension_numbers<[1], [0], [0], [1], [0, 0, 1, 1], [], []>} : vector<8x24xf32>, vector<24x256xf32>, vector<8x256xf32> -> vector<8x256xf32>
    %c0_45 = arith.constant 0 : index
    %c0_46 = arith.constant 0 : index
    %120 = vector.load %arg10[%c0_45, %c0_46] : memref<8x1xf32, #tpu.memory_space<vmem>>, vector<8x1xf32>
    %121 = vector.broadcast %120 : vector<8x1xf32> to vector<8x256xf32>
    %122 = arith.addf %119, %121 : vector<8x256xf32>
    %123 = vector.broadcast %112 : vector<1x256xf32> to vector<8x256xf32>
    %124 = arith.mulf %123, %122 : vector<8x256xf32>
    %c0_47 = arith.constant 0 : index
    %c0_48 = arith.constant 0 : index
    %125 = vector.load %arg11[%c0_47, %c0_48] : memref<8x1xf32, #tpu.memory_space<vmem>>, vector<8x1xf32>
    %126 = vector.broadcast %125 : vector<8x1xf32> to vector<8x256xf32>
    %127 = arith.addf %124, %126 : vector<8x256xf32>
    %cst_49 = arith.constant 0.000000e+00 : f32
    %128 = vector.broadcast %cst_49 : f32 to vector<8x256xf32>
    %129 = arith.cmpf ogt, %127, %128 : vector<8x256xf32>
    %cst_50 = arith.constant 1.000000e-01 : f32
    %130 = vector.broadcast %cst_50 : f32 to vector<8x256xf32>
    %131 = arith.mulf %130, %127 : vector<8x256xf32>
    %132 = arith.select %129, %127, %131 : vector<8x256xi1>, vector<8x256xf32>
    %133 = vector.extract_strided_slice %132 {offsets = [0, 0], sizes = [8, 16], strides = [1, 1]} : vector<8x256xf32> to vector<8x16xf32>
    %134 = vector.extract_strided_slice %132 {offsets = [0, 16], sizes = [8, 16], strides = [1, 1]} : vector<8x256xf32> to vector<8x16xf32>
    %135 = arith.maximumf %133, %134 : vector<8x16xf32>
    %c0_51 = arith.constant 0 : index
    %c0_52 = arith.constant 0 : index
    %c0_53 = arith.constant 0 : index
    %136 = vector.load %arg12[%c0_51, %c0_52, %c0_53] : memref<1x8x128xf32, #tpu.memory_space<vmem>>, vector<1x8x16xf32>
    %137 = vector.shape_cast %136 : vector<1x8x16xf32> to vector<8x16xf32>
    %138 = vector.shape_cast %135 : vector<8x16xf32> to vector<1x8x16xf32>
    tpu.vector_store %arg12[%c0_51, %c0_52, %c0_53], %138 {strides = array<i32>} : memref<1x8x128xf32, #tpu.memory_space<vmem>>, vector<1x8x16xf32>,
    %139 = vector.extract_strided_slice %132 {offsets = [0, 32], sizes = [8, 16], strides = [1, 1]} : vector<8x256xf32> to vector<8x16xf32>
    %140 = vector.extract_strided_slice %132 {offsets = [0, 48], sizes = [8, 16], strides = [1, 1]} : vector<8x256xf32> to vector<8x16xf32>
    %141 = arith.maximumf %139, %140 : vector<8x16xf32>
    %c0_54 = arith.constant 0 : index
    %c0_55 = arith.constant 0 : index
    %c16_56 = arith.constant 16 : index
    %142 = vector.load %arg12[%c0_54, %c0_55, %c16_56] : memref<1x8x128xf32, #tpu.memory_space<vmem>>, vector<1x8x16xf32>
    %143 = vector.shape_cast %142 : vector<1x8x16xf32> to vector<8x16xf32>
    %144 = vector.shape_cast %141 : vector<8x16xf32> to vector<1x8x16xf32>
    tpu.vector_store %arg12[%c0_54, %c0_55, %c16_56], %144 {strides = array<i32>} : memref<1x8x128xf32, #tpu.memory_space<vmem>>, vector<1x8x16xf32>,
    %145 = vector.extract_strided_slice %132 {offsets = [0, 64], sizes = [8, 16], strides = [1, 1]} : vector<8x256xf32> to vector<8x16xf32>
    %146 = vector.extract_strided_slice %132 {offsets = [0, 80], sizes = [8, 16], strides = [1, 1]} : vector<8x256xf32> to vector<8x16xf32>
    %147 = arith.maximumf %145, %146 : vector<8x16xf32>
    %c0_57 = arith.constant 0 : index
    %c0_58 = arith.constant 0 : index
    %c32_59 = arith.constant 32 : index
    %148 = vector.load %arg12[%c0_57, %c0_58, %c32_59] : memref<1x8x128xf32, #tpu.memory_space<vmem>>, vector<1x8x16xf32>
    %149 = vector.shape_cast %148 : vector<1x8x16xf32> to vector<8x16xf32>
    %150 = vector.shape_cast %147 : vector<8x16xf32> to vector<1x8x16xf32>
    tpu.vector_store %arg12[%c0_57, %c0_58, %c32_59], %150 {strides = array<i32>} : memref<1x8x128xf32, #tpu.memory_space<vmem>>, vector<1x8x16xf32>,
    %151 = vector.extract_strided_slice %132 {offsets = [0, 96], sizes = [8, 16], strides = [1, 1]} : vector<8x256xf32> to vector<8x16xf32>
    %152 = vector.extract_strided_slice %132 {offsets = [0, 112], sizes = [8, 16], strides = [1, 1]} : vector<8x256xf32> to vector<8x16xf32>
    %153 = arith.maximumf %151, %152 : vector<8x16xf32>
    %c0_60 = arith.constant 0 : index
    %c0_61 = arith.constant 0 : index
    %c48 = arith.constant 48 : index
    %154 = vector.load %arg12[%c0_60, %c0_61, %c48] : memref<1x8x128xf32, #tpu.memory_space<vmem>>, vector<1x8x16xf32>
    %155 = vector.shape_cast %154 : vector<1x8x16xf32> to vector<8x16xf32>
    %156 = vector.shape_cast %153 : vector<8x16xf32> to vector<1x8x16xf32>
    tpu.vector_store %arg12[%c0_60, %c0_61, %c48], %156 {strides = array<i32>} : memref<1x8x128xf32, #tpu.memory_space<vmem>>, vector<1x8x16xf32>,
    %157 = vector.extract_strided_slice %132 {offsets = [0, 128], sizes = [8, 16], strides = [1, 1]} : vector<8x256xf32> to vector<8x16xf32>
    %158 = vector.extract_strided_slice %132 {offsets = [0, 144], sizes = [8, 16], strides = [1, 1]} : vector<8x256xf32> to vector<8x16xf32>
    %159 = arith.maximumf %157, %158 : vector<8x16xf32>
    %c0_62 = arith.constant 0 : index
    %c0_63 = arith.constant 0 : index
    %c64 = arith.constant 64 : index
    %160 = vector.load %arg12[%c0_62, %c0_63, %c64] : memref<1x8x128xf32, #tpu.memory_space<vmem>>, vector<1x8x16xf32>
    %161 = vector.shape_cast %160 : vector<1x8x16xf32> to vector<8x16xf32>
    %162 = vector.shape_cast %159 : vector<8x16xf32> to vector<1x8x16xf32>
    tpu.vector_store %arg12[%c0_62, %c0_63, %c64], %162 {strides = array<i32>} : memref<1x8x128xf32, #tpu.memory_space<vmem>>, vector<1x8x16xf32>,
    %163 = vector.extract_strided_slice %132 {offsets = [0, 160], sizes = [8, 16], strides = [1, 1]} : vector<8x256xf32> to vector<8x16xf32>
    %164 = vector.extract_strided_slice %132 {offsets = [0, 176], sizes = [8, 16], strides = [1, 1]} : vector<8x256xf32> to vector<8x16xf32>
    %165 = arith.maximumf %163, %164 : vector<8x16xf32>
    %c0_64 = arith.constant 0 : index
    %c0_65 = arith.constant 0 : index
    %c80 = arith.constant 80 : index
    %166 = vector.load %arg12[%c0_64, %c0_65, %c80] : memref<1x8x128xf32, #tpu.memory_space<vmem>>, vector<1x8x16xf32>
    %167 = vector.shape_cast %166 : vector<1x8x16xf32> to vector<8x16xf32>
    %168 = vector.shape_cast %165 : vector<8x16xf32> to vector<1x8x16xf32>
    tpu.vector_store %arg12[%c0_64, %c0_65, %c80], %168 {strides = array<i32>} : memref<1x8x128xf32, #tpu.memory_space<vmem>>, vector<1x8x16xf32>,
    %169 = vector.extract_strided_slice %132 {offsets = [0, 192], sizes = [8, 16], strides = [1, 1]} : vector<8x256xf32> to vector<8x16xf32>
    %170 = vector.extract_strided_slice %132 {offsets = [0, 208], sizes = [8, 16], strides = [1, 1]} : vector<8x256xf32> to vector<8x16xf32>
    %171 = arith.maximumf %169, %170 : vector<8x16xf32>
    %c0_66 = arith.constant 0 : index
    %c0_67 = arith.constant 0 : index
    %c96 = arith.constant 96 : index
    %172 = vector.load %arg12[%c0_66, %c0_67, %c96] : memref<1x8x128xf32, #tpu.memory_space<vmem>>, vector<1x8x16xf32>
    %173 = vector.shape_cast %172 : vector<1x8x16xf32> to vector<8x16xf32>
    %174 = vector.shape_cast %171 : vector<8x16xf32> to vector<1x8x16xf32>
    tpu.vector_store %arg12[%c0_66, %c0_67, %c96], %174 {strides = array<i32>} : memref<1x8x128xf32, #tpu.memory_space<vmem>>, vector<1x8x16xf32>,
    %175 = vector.extract_strided_slice %132 {offsets = [0, 224], sizes = [8, 16], strides = [1, 1]} : vector<8x256xf32> to vector<8x16xf32>
    %176 = vector.extract_strided_slice %132 {offsets = [0, 240], sizes = [8, 16], strides = [1, 1]} : vector<8x256xf32> to vector<8x16xf32>
    %177 = arith.maximumf %175, %176 : vector<8x16xf32>
    %c0_68 = arith.constant 0 : index
    %c0_69 = arith.constant 0 : index
    %c112 = arith.constant 112 : index
    %178 = vector.load %arg12[%c0_68, %c0_69, %c112] : memref<1x8x128xf32, #tpu.memory_space<vmem>>, vector<1x8x16xf32>
    %179 = vector.shape_cast %178 : vector<1x8x16xf32> to vector<8x16xf32>
    %180 = vector.shape_cast %177 : vector<8x16xf32> to vector<1x8x16xf32>
    tpu.vector_store %arg12[%c0_68, %c0_69, %c112], %180 {strides = array<i32>} : memref<1x8x128xf32, #tpu.memory_space<vmem>>, vector<1x8x16xf32>,
    return
  }
  func.func @transform_0(%arg0: i32) -> (i32, i32, i32) {
    %c0_i32 = arith.constant 0 : i32
    %c0_i32_0 = arith.constant 0 : i32
    %c0_i32_1 = arith.constant 0 : i32
    return %arg0, %c0_i32, %c0_i32_0 : i32, i32, i32
  }
  func.func @transform_1(%arg0: i32) -> (i32, i32) {
    %c0_i32 = arith.constant 0 : i32
    %c0_i32_0 = arith.constant 0 : i32
    %c0_i32_1 = arith.constant 0 : i32
    return %c0_i32, %c0_i32_0 : i32, i32
  }
  func.func @transform_2(%arg0: i32) -> (i32, i32) {
    %c0_i32 = arith.constant 0 : i32
    %c0_i32_0 = arith.constant 0 : i32
    %c0_i32_1 = arith.constant 0 : i32
    return %c0_i32, %c0_i32_0 : i32, i32
  }
  func.func @transform_3(%arg0: i32) -> (i32, i32) {
    %c0_i32 = arith.constant 0 : i32
    %c0_i32_0 = arith.constant 0 : i32
    %c0_i32_1 = arith.constant 0 : i32
    return %c0_i32, %c0_i32_0 : i32, i32
  }
  func.func @transform_4(%arg0: i32) -> (i32, i32) {
    %c0_i32 = arith.constant 0 : i32
    %c0_i32_0 = arith.constant 0 : i32
    %c0_i32_1 = arith.constant 0 : i32
    return %c0_i32, %c0_i32_0 : i32, i32
  }
  func.func @transform_5(%arg0: i32) -> (i32, i32) {
    %c0_i32 = arith.constant 0 : i32
    %c0_i32_0 = arith.constant 0 : i32
    %c0_i32_1 = arith.constant 0 : i32
    return %c0_i32, %c0_i32_0 : i32, i32
  }
  func.func @transform_6(%arg0: i32) -> (i32, i32) {
    %c0_i32 = arith.constant 0 : i32
    %c0_i32_0 = arith.constant 0 : i32
    %c0_i32_1 = arith.constant 0 : i32
    return %c0_i32, %c0_i32_0 : i32, i32
  }
  func.func @transform_7(%arg0: i32) -> (i32, i32) {
    %c0_i32 = arith.constant 0 : i32
    %c0_i32_0 = arith.constant 0 : i32
    %c0_i32_1 = arith.constant 0 : i32
    return %c0_i32, %c0_i32_0 : i32, i32
  }
  func.func @transform_8(%arg0: i32) -> (i32, i32) {
    %c0_i32 = arith.constant 0 : i32
    %c0_i32_0 = arith.constant 0 : i32
    %c0_i32_1 = arith.constant 0 : i32
    return %c0_i32, %c0_i32_0 : i32, i32
  }
  func.func @transform_9(%arg0: i32) -> (i32, i32) {
    %c0_i32 = arith.constant 0 : i32
    %c0_i32_0 = arith.constant 0 : i32
    %c0_i32_1 = arith.constant 0 : i32
    return %c0_i32, %c0_i32_0 : i32, i32
  }
  func.func @transform_10(%arg0: i32) -> (i32, i32) {
    %c0_i32 = arith.constant 0 : i32
    %c0_i32_0 = arith.constant 0 : i32
    %c0_i32_1 = arith.constant 0 : i32
    return %c0_i32, %c0_i32_0 : i32, i32
  }
  func.func @transform_11(%arg0: i32) -> (i32, i32, i32) {
    %c0_i32 = arith.constant 0 : i32
    %c0_i32_0 = arith.constant 0 : i32
    %c0_i32_1 = arith.constant 0 : i32
    return %arg0, %c0_i32, %c0_i32_0 : i32, i32, i32
  }
}

</mosaic_0001>

<llo_original>
// kernel: tpu_custom_call.1
$region0: #{tpu_custom_call.1}
  #allocation0 [shape = 'u32[]', space=smem, size = 0x4, offset = 0x4, fixed_abs, tag = 'smem constant byte address 0x4 - core index']
  #allocation1 [shape = 'u32[144,128]{1,0:T(1,128)}', space=vmem, size = 0x12000, scoped, tag = 'internal scratch']
  #allocation2 [shape = 'f32[8,288]{1,0:T(8,128)}', space=vmem, size = 0x3000, scoped, tag = 'scratch operand']
  #allocation3 [shape = 'f32[1,1]{1,0:T(1,128)S(1)}', space=vmem, size = 0x200, scoped, tag = 'scoped memory for tpu_custom_call.1']
  #allocation4 [shape = 'f32[1,1]{1,0:T(1,128)S(1)}', space=vmem, size = 0x200, scoped, tag = 'scoped memory for tpu_custom_call.1']
  %s0 = inlined_call_operand.vmem [shape: f32[1,4,256], index: 0, kind: input, shape index: {}]
  %s1 = inlined_call_operand.vmem [shape: f32[8,12], index: 1, kind: input, shape index: {}]
  %s2 = inlined_call_operand.vmem [shape: f32[1,4], index: 2, kind: input, shape index: {}]
  %s3 = inlined_call_operand.<no memory space> [shape: f32[1,1], index: 3, kind: input, shape index: {}]
  %s4 = inlined_call_operand.vmem [shape: f32[8,1], index: 4, kind: input, shape index: {}]
  %s5 = inlined_call_operand.vmem [shape: f32[8,1], index: 5, kind: input, shape index: {}]
  %s6 = inlined_call_operand.vmem [shape: f32[8,24], index: 6, kind: input, shape index: {}]
  %s7 = inlined_call_operand.vmem [shape: f32[1,8], index: 7, kind: input, shape index: {}]
  %s8 = inlined_call_operand.<no memory space> [shape: f32[1,1], index: 8, kind: input, shape index: {}]
  %s9 = inlined_call_operand.vmem [shape: f32[8,1], index: 9, kind: input, shape index: {}]
  %s10 = inlined_call_operand.vmem [shape: f32[8,1], index: 10, kind: input, shape index: {}]
  %s11 = inlined_call_operand.hbm [shape: f32[1,8,128], index: 11, kind: output, shape index: {}]
  %s12 = sld [smem:[#allocation0]]
  $region54: #{tpu_custom_call.1} parent=0
    _
  %s14 = ssub.s32 1, %s12
  %s15 = scalar_select 0, %s14, %s12
  %v16 = vstv %s3
  %17 = vst [vmem:[#allocation3] sm:$0x1] %v16
  %v18 = vstv %s8
  %19 = vst [vmem:[#allocation4] sm:$0x1] %v18
  $region1: #{tpu_custom_call.1} parent=0
    #allocation5 [shape = 'u8[4096]{0}', space=vmem, size = 0x1000, scoped, tag = 'output window, operand 0, single buffered']
    #allocation6 [shape = 's32[1]{0}', space=sflag, size = 0x4, scoped, tag = 'scoped memory for tpu_custom_call.1']
    %20 = vsyncpa [#allocation6], 0
    // Predicated region
    $region2: #{tpu_custom_call.1} parent=1 // pred_check
      _
    $region3: #{tpu_custom_call.1} parent=1 // pred_check_branch
      %22 = sbr.rel (0) target = $region5
    $region4: #{tpu_custom_call.1} parent=1 // pred_region
      _
    $region5: #{tpu_custom_call.1} parent=1 // pred_fallthru
      _
    // Predicated region
    $region6: #{tpu_custom_call.1} parent=1 // pred_check
      _
    $region7: #{tpu_custom_call.1} parent=1 // pred_check_branch
      %24 = sbr.rel (0) target = $region9
    $region8: #{tpu_custom_call.1} parent=1 // pred_region
      _
    $region9: #{tpu_custom_call.1} parent=1 // pred_fallthru
      _
    // Predicated region
    $region10: #{tpu_custom_call.1} parent=1 // pred_check
      _
    $region11: #{tpu_custom_call.1} parent=1 // pred_check_branch
      %26 = sbr.rel (0) target = $region13
    $region12: #{tpu_custom_call.1} parent=1 // pred_region
      _
    $region13: #{tpu_custom_call.1} parent=1 // pred_fallthru
      _
    // Predicated region
    $region14: #{tpu_custom_call.1} parent=1 // pred_check
      _
    $region15: #{tpu_custom_call.1} parent=1 // pred_check_branch
      %28 = sbr.rel (0) target = $region17
    $region16: #{tpu_custom_call.1} parent=1 // pred_region
      _
    $region17: #{tpu_custom_call.1} parent=1 // pred_fallthru
      _
    // Predicated region
    $region18: #{tpu_custom_call.1} parent=1 // pred_check
      _
    $region19: #{tpu_custom_call.1} parent=1 // pred_check_branch
      %30 = sbr.rel (0) target = $region21
    $region20: #{tpu_custom_call.1} parent=1 // pred_region
      _
    $region21: #{tpu_custom_call.1} parent=1 // pred_fallthru
      _
    // Predicated region
    $region22: #{tpu_custom_call.1} parent=1 // pred_check
      _
    $region23: #{tpu_custom_call.1} parent=1 // pred_check_branch
      %32 = sbr.rel (0) target = $region25
    $region24: #{tpu_custom_call.1} parent=1 // pred_region
      _
    $region25: #{tpu_custom_call.1} parent=1 // pred_fallthru
      _
    // Predicated region
    $region26: #{tpu_custom_call.1} parent=1 // pred_check
      _
    $region27: #{tpu_custom_call.1} parent=1 // pred_check_branch
      %34 = sbr.rel (0) target = $region29
    $region28: #{tpu_custom_call.1} parent=1 // pred_region
      _
    $region29: #{tpu_custom_call.1} parent=1 // pred_fallthru
      _
    // Predicated region
    $region30: #{tpu_custom_call.1} parent=1 // pred_check
      _
    $region31: #{tpu_custom_call.1} parent=1 // pred_check_branch
      %36 = sbr.rel (0) target = $region33
    $region32: #{tpu_custom_call.1} parent=1 // pred_region
      _
    $region33: #{tpu_custom_call.1} parent=1 // pred_fallthru
      _
    // Predicated region
    $region34: #{tpu_custom_call.1} parent=1 // pred_check
      _
    $region35: #{tpu_custom_call.1} parent=1 // pred_check_branch
      %38 = sbr.rel (0) target = $region37
    $region36: #{tpu_custom_call.1} parent=1 // pred_region
      _
    $region37: #{tpu_custom_call.1} parent=1 // pred_fallthru
      _
    // Predicated region
    $region38: #{tpu_custom_call.1} parent=1 // pred_check
      _
    $region39: #{tpu_custom_call.1} parent=1 // pred_check_branch
      %40 = sbr.rel (0) target = $region41
    $region40: #{tpu_custom_call.1} parent=1 // pred_region
      _
    $region41: #{tpu_custom_call.1} parent=1 // pred_fallthru
      _
    // Predicated region
    $region42: #{tpu_custom_call.1} parent=1 // pred_check
      _
    $region43: #{tpu_custom_call.1} parent=1 // pred_check_branch
      %42 = sbr.rel (0) target = $region45
    $region44: #{tpu_custom_call.1} parent=1 // pred_region
      _
    $region45: #{tpu_custom_call.1} parent=1 // pred_fallthru
      _
    %vm43 = vcmask 130048
    %44 = vst.msk [vmem:[#allocation2] sm:$0xff] %vm43, 0.0
    %vm45 = vcmask 261248
    %46 = vst.msk [vmem:[#allocation2 + $0x10] sm:$0xff] %vm45, 0.0
    %v47 = vld [vmem:[%s0] sm:$0xff]
    %49 = vrot.lane.b32.xlu0 %v47, 112
    %v50 = vpop.permute.xlu0 %49
    %v52 = vadd.f32 %v47, %v50
    %v53 = vrot.slane %v47, 4
    %v55 = vrot.slane %v50, 4
    %v57 = vadd.f32 %v53, %v55
    %58 = vrot.lane.b32.xlu0 %v47, 96
    %v59 = vpop.permute.xlu0 %58
    %v60 = vrot.slane %v59, 4
    %62 = vrot.lane.b32.xlu0 %v47, 80
    %v63 = vpop.permute.xlu0 %62
    %v64 = vrot.slane %v63, 4
    %v66 = vadd.f32 %v60, %v64
    %67 = vrot.lane.b32.xlu0 %v47, 64
    %v68 = vpop.permute.xlu0 %67
    %v69 = vrot.slane %v68, 4
    %71 = vrot.lane.b32.xlu0 %v47, 48
    %v72 = vpop.permute.xlu0 %71
    %v73 = vrot.slane %v72, 4
    %v75 = vadd.f32 %v69, %v73
    %76 = vrot.lane.b32.xlu0 %v47, 32
    %v77 = vpop.permute.xlu0 %76
    %v78 = vrot.slane %v77, 4
    %80 = vrot.lane.b32.xlu0 %v47, 16
    %v81 = vpop.permute.xlu0 %80
    %v82 = vrot.slane %v81, 4
    %v84 = vadd.f32 %v78, %v82
    %86 = vrot.lane.b32.xlu0 %v52, 96
    %v87 = vpop.permute.xlu0 %86
    %v89 = vadd.f32 %v52, %v87
    %v90 = vadd.f32 %v57, %v66
    %v91 = vadd.f32 %v75, %v84
    %93 = vrot.lane.b32.xlu0 %v89, 64
    %v94 = vpop.permute.xlu0 %93
    %v96 = vadd.f32 %v89, %v94
    %v97 = vadd.f32 %v90, %v91
    %v98 = vadd.f32 %v96, %v97
    %v99 = vmul.f32 %v98, 0.0625
    %v100 = vld [vmem:[%s2] sm:$0x1]
    %v101 = vld [vmem:[#allocation3] sm:$0x1]
    %103 = vset.pattern.permute.xlu0 0
    %104 = vperm.xlu0 %103, %v101
    %v105 = vpop.permute.xlu0 %104
    %v107 = vlaneseq
    %v108 = vshrl.u32 %v107, 7
    %v109 = vsub.s32 0, %v108
    %v110 = vrot.slane %v105, %v109
    %vm111 = vcmask 31744
    %v113 = vsel %vm111, %v100, 0
    %vm115 = vcmask 1043456
    %v117 = vsel %vm115, %v99, 0
    %119 = vmatprep.subr.mxu0 0.0
    %120 = vmatpush1.msra.mxu0 0.0
    %121 = vmatprep.subr.mxu0 0.0
    %122 = vmatpush1.msra.mxu0 0.0
    %123 = vmatprep.subr.mxu0 0.0
    %124 = vmatpush1.msra.mxu0 0.0
    %125 = vmatprep.subr.mxu0 0.0
    %126 = vmatpush1.msra.mxu0 0.0
    %127 = vmatprep.subr.mxu0 0.0
    %128 = vmatpush1.msra.mxu0 0.0
    %129 = vmatprep.subr.mxu0 0.0
    %130 = vmatpush1.msra.mxu0 0.0
    %131 = vmatprep.subr.mxu0 0.0
    %132 = vmatpush1.msra.mxu0 0.0
    %133 = vmatprep.subr.mxu0 0.0
    %134 = vmatpush1.msra.mxu0 0.0
    %135 = vmatprep.subr.mxu0 0.0
    %136 = vmatpush1.msra.mxu0 0.0
    %137 = vmatprep.subr.mxu0 0.0
    %138 = vmatpush1.msra.mxu0 0.0
    %139 = vmatprep.subr.mxu0 0.0
    %140 = vmatpush1.msra.mxu0 0.0
    %141 = vmatprep.subr.mxu0 0.0
    %142 = vmatpush1.msra.mxu0 0.0
    %143 = vmatprep.subr.mxu0 0.0
    %144 = vmatpush1.msra.mxu0 0.0
    %145 = vmatprep.subr.mxu0 0.0
    %146 = vmatpush1.msra.mxu0 0.0
    %147 = vmatprep.subr.mxu0 0.0
    %148 = vmatpush1.msra.mxu0 0.0
    %149 = vmatprep.subr.mxu0 0.0
    %150 = vmatpush1.msra.mxu0 %v117
    %151 = vmatprep.subr.mxu0 0.0
    %152 = vmatpush2.msra.mxu0 0.0
    %153 = vmatprep.subr.mxu0 0.0
    %154 = vmatpush2.msra.mxu0 0.0
    %155 = vmatprep.subr.mxu0 0.0
    %156 = vmatpush2.msra.mxu0 0.0
    %157 = vmatprep.subr.mxu0 0.0
    %158 = vmatpush2.msra.mxu0 0.0
    %159 = vmatprep.subr.mxu0 0.0
    %160 = vmatpush2.msra.mxu0 0.0
    %161 = vmatprep.subr.mxu0 0.0
    %162 = vmatpush2.msra.mxu0 0.0
    %163 = vmatprep.subr.mxu0 0.0
    %164 = vmatpush2.msra.mxu0 0.0
    %165 = vmatprep.subr.mxu0 0.0
    %166 = vmatpush2.msra.mxu0 0.0
    %167 = vmatprep.subr.mxu0 0.0
    %168 = vmatpush2.msra.mxu0 0.0
    %169 = vmatprep.subr.mxu0 0.0
    %170 = vmatpush2.msra.mxu0 0.0
    %171 = vmatprep.subr.mxu0 0.0
    %172 = vmatpush2.msra.mxu0 0.0
    %173 = vmatprep.subr.mxu0 0.0
    %174 = vmatpush2.msra.mxu0 0.0
    %175 = vmatprep.subr.mxu0 0.0
    %176 = vmatpush2.msra.mxu0 0.0
    %177 = vmatprep.subr.mxu0 0.0
    %178 = vmatpush2.msra.mxu0 0.0
    %179 = vmatprep.subr.mxu0 0.0
    %180 = vmatpush2.msra.mxu0 0.0
    %181 = vmatprep.subr.mxu0 0.0
    %182 = vmatpush2.msra.mxu0 0.0
    %183 = vmatprep.mubr.f32.mxu0 0.0
    %184 = vmatmul.mubr.f32.gmra.mxu0 %v113
    %v185 = vpop.f32.mrf.mxu0
    %v186 = vadd.f32 %v110, %v185
    %v187 = vpop.f32.mrf.mxu0
    %188 = vdwg.mxu0
    %v189 = vxor.u32 %v186, 2147483648
    %v190 = vmul.f32 %v189, 1.442695
    %v191 = vpow.pop %v190
    %v192 = vadd.f32 %v191, 1.0
    %v193 = vrcp.pop %v192
    %v194 = vmul.f32 1.0, %v193
    %196 = vrot.lane.b32.xlu0 %v194, 16
    %v197 = vpop.permute.xlu0 %196
    %199 = vrot.lane.b32.xlu0 %v194, 32
    %v200 = vpop.permute.xlu0 %199
    %202 = vrot.lane.b32.xlu0 %v194, 48
    %v203 = vpop.permute.xlu0 %202
    %205 = vrot.lane.b32.xlu0 %v194, 64
    %v206 = vpop.permute.xlu0 %205
    %208 = vrot.lane.b32.xlu0 %v194, 80
    %v209 = vpop.permute.xlu0 %208
    %211 = vrot.lane.b32.xlu0 %v194, 96
    %v212 = vpop.permute.xlu0 %211
    %214 = vrot.lane.b32.xlu0 %v194, 112
    %v215 = vpop.permute.xlu0 %214
    %v217 = vsel %vm43, %v194, %v197
    %vm218 = vcmask 261120
    %v219 = vsel %vm218, %v217, %v200
    %vm220 = vcmask 392192
    %v221 = vsel %vm220, %v219, %v203
    %vm222 = vcmask 523264
    %v223 = vsel %vm222, %v221, %v206
    %vm224 = vcmask 654336
    %v225 = vsel %vm224, %v223, %v209
    %vm226 = vcmask 785408
    %v227 = vsel %vm226, %v225, %v212
    %vm228 = vcmask 916480
    %v229 = vsel %vm228, %v227, %v215
    %v230 = vcombine.high %v47, %v47
    %231 = vrot.lane.b32.xlu0 %v230, 16
    %v232 = vpop.permute.xlu0 %231
    %v233 = vsel %vm43, %v81, %v232
    %vm237 = vcmask 1043584
    %238 = vst.msk [vmem:[#allocation2] sm:$0xf] %vm237, %v81
    %239 = vst [vmem:[#allocation2 + $0x8] sm:$0xf] %v233
    %vm240 = vcmask 125952
    %241 = vst.msk [vmem:[#allocation2 + $0x10] sm:$0xf] %vm240, %v232
    %v242 = vld [vmem:[#allocation2] sm:$0xf]
    %v243 = vld [vmem:[#allocation2 + $0x8] sm:$0xf]
    %v244 = vld [vmem:[#allocation2 + $0x10] sm:$0xf]
    %v248 = vrot.slane %v242, 4
    %v249 = vrot.slane %v243, 4
    %v250 = vrot.slane %v244, 4
    %251 = vrot.lane.b32.xlu0 %v248, 112
    %v252 = vpop.permute.xlu0 %251
    %253 = vrot.lane.b32.xlu0 %v249, 112
    %v254 = vpop.permute.xlu0 %253
    %255 = vrot.lane.b32.xlu0 %v250, 112
    %v256 = vpop.permute.xlu0 %255
    %v257 = vsel %vm228, %v252, %v254
    %v258 = vsel %vm228, %v254, %v256
    %261 = vrot.lane.b32.xlu0 %v242, 96
    %v262 = vpop.permute.xlu0 %261
    %263 = vrot.lane.b32.xlu0 %v243, 96
    %v264 = vpop.permute.xlu0 %263
    %265 = vrot.lane.b32.xlu0 %v244, 96
    %v266 = vpop.permute.xlu0 %265
    %v267 = vsel %vm226, %v262, %v264
    %v268 = vsel %vm226, %v264, %v266
    %v269 = vsel %vm115, %v242, %v257
    %v270 = vsel %vm115, %v243, %v258
    %v271 = vld [vmem:[%s1] sm:$0xff]
    %v272 = vld [vmem:[%s4] sm:$0xff]
    %274 = vset.pattern.permute.xlu0 0
    %275 = vperm.xlu0 %274, %v272
    %v276 = vpop.permute.xlu0 %275
    %vm278 = vcmask 97280
    %v280 = vsel %vm278, %v271, 0
    %v282 = vsel %vm115, %v267, 0
    %v284 = vsel %vm115, %v268, 0
    %286 = vmatprep.subr.mxu0 0.0
    %287 = vmatpush1.msra.mxu0 0.0
    %288 = vmatprep.subr.mxu0 0.0
    %289 = vmatpush1.msra.mxu0 0.0
    %290 = vmatprep.subr.mxu0 0.0
    %291 = vmatpush1.msra.mxu0 0.0
    %292 = vmatprep.subr.mxu0 0.0
    %293 = vmatpush1.msra.mxu0 0.0
    %294 = vmatprep.subr.mxu0 0.0
    %295 = vmatpush1.msra.mxu0 0.0
    %296 = vmatprep.subr.mxu0 0.0
    %297 = vmatpush1.msra.mxu0 0.0
    %298 = vmatprep.subr.mxu0 0.0
    %299 = vmatpush1.msra.mxu0 0.0
    %300 = vmatprep.subr.mxu0 0.0
    %301 = vmatpush1.msra.mxu0 0.0
    %302 = vmatprep.subr.mxu0 0.0
    %303 = vmatpush1.msra.mxu0 0.0
    %304 = vmatprep.subr.mxu0 0.0
    %305 = vmatpush1.msra.mxu0 0.0
    %306 = vmatprep.subr.mxu0 0.0
    %307 = vmatpush1.msra.mxu0 0.0
    %308 = vmatprep.subr.mxu0 0.0
    %309 = vmatpush1.msra.mxu0 0.0
    %310 = vmatprep.subr.mxu0 0.0
    %311 = vmatpush1.msra.mxu0 0.0
    %312 = vmatprep.subr.mxu0 0.0
    %313 = vmatpush1.msra.mxu0 0.0
    %314 = vmatprep.subr.mxu0 %v284
    %315 = vmatpush1.msra.mxu0 %v282
    %316 = vmatprep.subr.mxu0 %v270
    %317 = vmatpush1.msra.mxu0 %v269
    %318 = vmatprep.subr.mxu0 0.0
    %319 = vmatpush2.msra.mxu0 0.0
    %320 = vmatprep.subr.mxu0 0.0
    %321 = vmatpush2.msra.mxu0 0.0
    %322 = vmatprep.subr.mxu0 0.0
    %323 = vmatpush2.msra.mxu0 0.0
    %324 = vmatprep.subr.mxu0 0.0
    %325 = vmatpush2.msra.mxu0 0.0
    %326 = vmatprep.subr.mxu0 0.0
    %327 = vmatpush2.msra.mxu0 0.0
    %328 = vmatprep.subr.mxu0 0.0
    %329 = vmatpush2.msra.mxu0 0.0
    %330 = vmatprep.subr.mxu0 0.0
    %331 = vmatpush2.msra.mxu0 0.0
    %332 = vmatprep.subr.mxu0 0.0
    %333 = vmatpush2.msra.mxu0 0.0
    %334 = vmatprep.subr.mxu0 0.0
    %335 = vmatpush2.msra.mxu0 0.0
    %336 = vmatprep.subr.mxu0 0.0
    %337 = vmatpush2.msra.mxu0 0.0
    %338 = vmatprep.subr.mxu0 0.0
    %339 = vmatpush2.msra.mxu0 0.0
    %340 = vmatprep.subr.mxu0 0.0
    %341 = vmatpush2.msra.mxu0 0.0
    %342 = vmatprep.subr.mxu0 0.0
    %343 = vmatpush2.msra.mxu0 0.0
    %344 = vmatprep.subr.mxu0 0.0
    %345 = vmatpush2.msra.mxu0 0.0
    %346 = vmatprep.subr.mxu0 0.0
    %347 = vmatpush2.msra.mxu0 0.0
    %348 = vmatprep.subr.mxu0 0.0
    %349 = vmatpush2.msra.mxu0 0.0
    %350 = vmatprep.mubr.f32.mxu0 0.0
    %351 = vmatmul.mubr.f32.gmra.mxu0 %v280
    %v352 = vpop.f32.mrf.mxu0
    %v353 = vadd.f32 %v276, %v352
    %v354 = vpop.f32.mrf.mxu0
    %v355 = vadd.f32 %v276, %v354
    %356 = vdwg.mxu0
    %v357 = vlaneseq
    %v358 = vshrl.u32 %v357, 7
    %v359 = vsub.s32 0, %v358
    %v360 = vrot.slane %v229, %v359
    %v361 = vmul.f32 %v360, %v353
    %v362 = vmul.f32 %v360, %v355
    %v363 = vld [vmem:[%s5] sm:$0xff]
    %365 = vset.pattern.permute.xlu0 0
    %366 = vperm.xlu0 %365, %v363
    %v367 = vpop.permute.xlu0 %366
    %v369 = vadd.f32 %v361, %v367
    %v370 = vadd.f32 %v362, %v367
    %vm371 = vcmp.gt.f32.partialorder %v369, 0.0
    %vm372 = vcmp.gt.f32.partialorder %v370, 0.0
    %v373 = vmul.f32 %v369, 0.1
    %v374 = vmul.f32 %v370, 0.1
    %v375 = vsel %vm371, %v369, %v373
    %v376 = vsel %vm372, %v370, %v374
    %378 = vrot.lane.b32.xlu0 %v375, 112
    %v379 = vpop.permute.xlu0 %378
    %v381 = vadd.f32 %v375, %v379
    %383 = vrot.lane.b32.xlu0 %v376, 112
    %v384 = vpop.permute.xlu0 %383
    %v386 = vadd.f32 %v376, %v384
    %388 = vrot.lane.b32.xlu0 %v381, 96
    %v389 = vpop.permute.xlu0 %388
    %v391 = vadd.f32 %v381, %v389
    %393 = vrot.lane.b32.xlu0 %v386, 96
    %v394 = vpop.permute.xlu0 %393
    %v396 = vadd.f32 %v386, %v394
    %398 = vrot.lane.b32.xlu0 %v391, 64
    %v399 = vpop.permute.xlu0 %398
    %v401 = vadd.f32 %v391, %v399
    %403 = vrot.lane.b32.xlu0 %v396, 64
    %v404 = vpop.permute.xlu0 %403
    %v406 = vadd.f32 %v396, %v404
    %v407 = vadd.f32 %v401, %v406
    %v408 = vmul.f32 %v407, 0.0625
    %v409 = vld [vmem:[%s7] sm:$0x1]
    %v410 = vld [vmem:[#allocation4] sm:$0x1]
    %412 = vset.pattern.permute.xlu0 0
    %413 = vperm.xlu0 %412, %v410
    %v414 = vpop.permute.xlu0 %413
    %v416 = vlaneseq
    %v417 = vshrl.u32 %v416, 7
    %v418 = vsub.s32 0, %v417
    %v419 = vrot.slane %v414, %v418
    %vm420 = vcmask 64512
    %v422 = vsel %vm420, %v409, 0
    %424 = vmatprep.subr.mxu0 0.0
    %425 = vmatpush1.msra.mxu0 0.0
    %426 = vmatprep.subr.mxu0 0.0
    %427 = vmatpush1.msra.mxu0 0.0
    %428 = vmatprep.subr.mxu0 0.0
    %429 = vmatpush1.msra.mxu0 0.0
    %430 = vmatprep.subr.mxu0 0.0
    %431 = vmatpush1.msra.mxu0 0.0
    %432 = vmatprep.subr.mxu0 0.0
    %433 = vmatpush1.msra.mxu0 0.0
    %434 = vmatprep.subr.mxu0 0.0
    %435 = vmatpush1.msra.mxu0 0.0
    %436 = vmatprep.subr.mxu0 0.0
    %437 = vmatpush1.msra.mxu0 0.0
    %438 = vmatprep.subr.mxu0 0.0
    %439 = vmatpush1.msra.mxu0 0.0
    %440 = vmatprep.subr.mxu0 0.0
    %441 = vmatpush1.msra.mxu0 0.0
    %442 = vmatprep.subr.mxu0 0.0
    %443 = vmatpush1.msra.mxu0 0.0
    %444 = vmatprep.subr.mxu0 0.0
    %445 = vmatpush1.msra.mxu0 0.0
    %446 = vmatprep.subr.mxu0 0.0
    %447 = vmatpush1.msra.mxu0 0.0
    %448 = vmatprep.subr.mxu0 0.0
    %449 = vmatpush1.msra.mxu0 0.0
    %450 = vmatprep.subr.mxu0 0.0
    %451 = vmatpush1.msra.mxu0 0.0
    %452 = vmatprep.subr.mxu0 0.0
    %453 = vmatpush1.msra.mxu0 0.0
    %454 = vmatprep.subr.mxu0 0.0
    %455 = vmatpush1.msra.mxu0 %v408
    %456 = vmatprep.subr.mxu0 0.0
    %457 = vmatpush2.msra.mxu0 0.0
    %458 = vmatprep.subr.mxu0 0.0
    %459 = vmatpush2.msra.mxu0 0.0
    %460 = vmatprep.subr.mxu0 0.0
    %461 = vmatpush2.msra.mxu0 0.0
    %462 = vmatprep.subr.mxu0 0.0
    %463 = vmatpush2.msra.mxu0 0.0
    %464 = vmatprep.subr.mxu0 0.0
    %465 = vmatpush2.msra.mxu0 0.0
    %466 = vmatprep.subr.mxu0 0.0
    %467 = vmatpush2.msra.mxu0 0.0
    %468 = vmatprep.subr.mxu0 0.0
    %469 = vmatpush2.msra.mxu0 0.0
    %470 = vmatprep.subr.mxu0 0.0
    %471 = vmatpush2.msra.mxu0 0.0
    %472 = vmatprep.subr.mxu0 0.0
    %473 = vmatpush2.msra.mxu0 0.0
    %474 = vmatprep.subr.mxu0 0.0
    %475 = vmatpush2.msra.mxu0 0.0
    %476 = vmatprep.subr.mxu0 0.0
    %477 = vmatpush2.msra.mxu0 0.0
    %478 = vmatprep.subr.mxu0 0.0
    %479 = vmatpush2.msra.mxu0 0.0
    %480 = vmatprep.subr.mxu0 0.0
    %481 = vmatpush2.msra.mxu0 0.0
    %482 = vmatprep.subr.mxu0 0.0
    %483 = vmatpush2.msra.mxu0 0.0
    %484 = vmatprep.subr.mxu0 0.0
    %485 = vmatpush2.msra.mxu0 0.0
    %486 = vmatprep.subr.mxu0 0.0
    %487 = vmatpush2.msra.mxu0 0.0
    %488 = vmatprep.mubr.f32.mxu0 0.0
    %489 = vmatmul.mubr.f32.gmra.mxu0 %v422
    %v490 = vpop.f32.mrf.mxu0
    %v491 = vadd.f32 %v419, %v490
    %v492 = vpop.f32.mrf.mxu0
    %493 = vdwg.mxu0
    %v494 = vxor.u32 %v491, 2147483648
    %v495 = vmul.f32 %v494, 1.442695
    %v496 = vpow.pop %v495
    %v497 = vadd.f32 %v496, 1.0
    %v498 = vrcp.pop %v497
    %v499 = vmul.f32 1.0, %v498
    %501 = vrot.lane.b32.xlu0 %v499, 16
    %v502 = vpop.permute.xlu0 %501
    %504 = vrot.lane.b32.xlu0 %v499, 32
    %v505 = vpop.permute.xlu0 %504
    %507 = vrot.lane.b32.xlu0 %v499, 48
    %v508 = vpop.permute.xlu0 %507
    %510 = vrot.lane.b32.xlu0 %v499, 64
    %v511 = vpop.permute.xlu0 %510
    %513 = vrot.lane.b32.xlu0 %v499, 80
    %v514 = vpop.permute.xlu0 %513
    %516 = vrot.lane.b32.xlu0 %v499, 96
    %v517 = vpop.permute.xlu0 %516
    %519 = vrot.lane.b32.xlu0 %v499, 112
    %v520 = vpop.permute.xlu0 %519
    %v522 = vsel %vm43, %v499, %v502
    %v523 = vsel %vm218, %v522, %v505
    %v524 = vsel %vm220, %v523, %v508
    %v525 = vsel %vm222, %v524, %v511
    %v526 = vsel %vm224, %v525, %v514
    %v527 = vsel %vm226, %v526, %v517
    %v528 = vsel %vm228, %v527, %v520
    %529 = vrot.lane.b32.xlu0 %v375, 16
    %v530 = vpop.permute.xlu0 %529
    %531 = vrot.lane.b32.xlu0 %v376, 16
    %v532 = vpop.permute.xlu0 %531
    %v533 = vsel %vm43, %v530, %v532
    %vm537 = vcmask 1047680
    %538 = vst.msk [vmem:[#allocation2] sm:$0xff] %vm537, %v530
    %539 = vst [vmem:[#allocation2 + $0x8] sm:$0xff] %v533
    %540 = vst.msk [vmem:[#allocation2 + $0x10] sm:$0xff] %vm43, %v532
    %v541 = vld [vmem:[#allocation2] sm:$0xff]
    %v542 = vld [vmem:[#allocation2 + $0x8] sm:$0xff]
    %v543 = vld [vmem:[#allocation2 + $0x10] sm:$0xff]
    %547 = vrot.lane.b32.xlu0 %v541, 112
    %v548 = vpop.permute.xlu0 %547
    %549 = vrot.lane.b32.xlu0 %v542, 112
    %v550 = vpop.permute.xlu0 %549
    %551 = vrot.lane.b32.xlu0 %v543, 112
    %v552 = vpop.permute.xlu0 %551
    %v553 = vsel %vm228, %v548, %v550
    %v554 = vsel %vm228, %v550, %v552
    %557 = vrot.lane.b32.xlu0 %v541, 96
    %v558 = vpop.permute.xlu0 %557
    %559 = vrot.lane.b32.xlu0 %v542, 96
    %v560 = vpop.permute.xlu0 %559
    %561 = vrot.lane.b32.xlu0 %v543, 96
    %v562 = vpop.permute.xlu0 %561
    %v563 = vsel %vm226, %v558, %v560
    %v564 = vsel %vm226, %v560, %v562
    %v567 = vld [vmem:[%s6] sm:$0xff]
    %v568 = vld [vmem:[%s9] sm:$0xff]
    %570 = vset.pattern.permute.xlu0 0
    %571 = vperm.xlu0 %570, %v568
    %v572 = vpop.permute.xlu0 %571
    %vm574 = vcmask 195584
    %v576 = vsel %vm574, %v567, 0
    %578 = vmatprep.subr.mxu0 0.0
    %579 = vmatpush1.msra.mxu0 0.0
    %580 = vmatprep.subr.mxu0 0.0
    %581 = vmatpush1.msra.mxu0 0.0
    %582 = vmatprep.subr.mxu0 0.0
    %583 = vmatpush1.msra.mxu0 0.0
    %584 = vmatprep.subr.mxu0 0.0
    %585 = vmatpush1.msra.mxu0 0.0
    %586 = vmatprep.subr.mxu0 0.0
    %587 = vmatpush1.msra.mxu0 0.0
    %588 = vmatprep.subr.mxu0 0.0
    %589 = vmatpush1.msra.mxu0 0.0
    %590 = vmatprep.subr.mxu0 0.0
    %591 = vmatpush1.msra.mxu0 0.0
    %592 = vmatprep.subr.mxu0 0.0
    %593 = vmatpush1.msra.mxu0 0.0
    %594 = vmatprep.subr.mxu0 0.0
    %595 = vmatpush1.msra.mxu0 0.0
    %596 = vmatprep.subr.mxu0 0.0
    %597 = vmatpush1.msra.mxu0 0.0
    %598 = vmatprep.subr.mxu0 0.0
    %599 = vmatpush1.msra.mxu0 0.0
    %600 = vmatprep.subr.mxu0 0.0
    %601 = vmatpush1.msra.mxu0 0.0
    %602 = vmatprep.subr.mxu0 0.0
    %603 = vmatpush1.msra.mxu0 0.0
    %604 = vmatprep.subr.mxu0 %v564
    %605 = vmatpush1.msra.mxu0 %v563
    %606 = vmatprep.subr.mxu0 %v554
    %607 = vmatpush1.msra.mxu0 %v553
    %608 = vmatprep.subr.mxu0 %v542
    %609 = vmatpush1.msra.mxu0 %v541
    %610 = vmatprep.subr.mxu0 0.0
    %611 = vmatpush2.msra.mxu0 0.0
    %612 = vmatprep.subr.mxu0 0.0
    %613 = vmatpush2.msra.mxu0 0.0
    %614 = vmatprep.subr.mxu0 0.0
    %615 = vmatpush2.msra.mxu0 0.0
    %616 = vmatprep.subr.mxu0 0.0
    %617 = vmatpush2.msra.mxu0 0.0
    %618 = vmatprep.subr.mxu0 0.0
    %619 = vmatpush2.msra.mxu0 0.0
    %620 = vmatprep.subr.mxu0 0.0
    %621 = vmatpush2.msra.mxu0 0.0
    %622 = vmatprep.subr.mxu0 0.0
    %623 = vmatpush2.msra.mxu0 0.0
    %624 = vmatprep.subr.mxu0 0.0
    %625 = vmatpush2.msra.mxu0 0.0
    %626 = vmatprep.subr.mxu0 0.0
    %627 = vmatpush2.msra.mxu0 0.0
    %628 = vmatprep.subr.mxu0 0.0
    %629 = vmatpush2.msra.mxu0 0.0
    %630 = vmatprep.subr.mxu0 0.0
    %631 = vmatpush2.msra.mxu0 0.0
    %632 = vmatprep.subr.mxu0 0.0
    %633 = vmatpush2.msra.mxu0 0.0
    %634 = vmatprep.subr.mxu0 0.0
    %635 = vmatpush2.msra.mxu0 0.0
    %636 = vmatprep.subr.mxu0 0.0
    %637 = vmatpush2.msra.mxu0 0.0
    %638 = vmatprep.subr.mxu0 0.0
    %639 = vmatpush2.msra.mxu0 0.0
    %640 = vmatprep.subr.mxu0 0.0
    %641 = vmatpush2.msra.mxu0 0.0
    %642 = vmatprep.mubr.f32.mxu0 0.0
    %643 = vmatmul.mubr.f32.gmra.mxu0 %v576
    %v644 = vpop.f32.mrf.mxu0
    %v645 = vadd.f32 %v572, %v644
    %v646 = vpop.f32.mrf.mxu0
    %v647 = vadd.f32 %v572, %v646
    %648 = vdwg.mxu0
    %v649 = vlaneseq
    %v650 = vshrl.u32 %v649, 7
    %v651 = vsub.s32 0, %v650
    %v652 = vrot.slane %v528, %v651
    %v653 = vmul.f32 %v652, %v645
    %v654 = vmul.f32 %v652, %v647
    %v655 = vld [vmem:[%s10] sm:$0xff]
    %657 = vset.pattern.permute.xlu0 0
    %658 = vperm.xlu0 %657, %v655
    %v659 = vpop.permute.xlu0 %658
    %v661 = vadd.f32 %v653, %v659
    %v662 = vadd.f32 %v654, %v659
    %vm663 = vcmp.gt.f32.partialorder %v661, 0.0
    %vm664 = vcmp.gt.f32.partialorder %v662, 0.0
    %v665 = vmul.f32 %v661, 0.1
    %v666 = vmul.f32 %v662, 0.1
    %v667 = vsel %vm663, %v661, %v665
    %v668 = vsel %vm664, %v662, %v666
    %670 = vrot.lane.b32.xlu0 %v667, 112
    %v671 = vpop.permute.xlu0 %670
    %v673 = vmax.f32 %v667, %v671
    %674 = vst.msk [vmem:[#allocation5] sm:$0xff] %vm43, %v673
    %676 = vrot.lane.b32.xlu0 %v673, 112
    %v677 = vpop.permute.xlu0 %676
    %679 = vst.msk [vmem:[#allocation5] sm:$0xff] %vm45, %v677
    %680 = vrot.lane.b32.xlu0 %v673, 96
    %v681 = vpop.permute.xlu0 %680
    %vm683 = vcmask 392448
    %684 = vst.msk [vmem:[#allocation5] sm:$0xff] %vm683, %v681
    %685 = vrot.lane.b32.xlu0 %v673, 80
    %v686 = vpop.permute.xlu0 %685
    %vm688 = vcmask 523648
    %689 = vst.msk [vmem:[#allocation5] sm:$0xff] %vm688, %v686
    %691 = vrot.lane.b32.xlu0 %v668, 112
    %v692 = vpop.permute.xlu0 %691
    %v694 = vmax.f32 %v668, %v692
    %696 = vrot.lane.b32.xlu0 %v694, 64
    %v697 = vpop.permute.xlu0 %696
    %vm699 = vcmask 654848
    %700 = vst.msk [vmem:[#allocation5] sm:$0xff] %vm699, %v697
    %701 = vrot.lane.b32.xlu0 %v694, 48
    %v702 = vpop.permute.xlu0 %701
    %vm704 = vcmask 786048
    %705 = vst.msk [vmem:[#allocation5] sm:$0xff] %vm704, %v702
    %706 = vrot.lane.b32.xlu0 %v694, 32
    %v707 = vpop.permute.xlu0 %706
    %vm709 = vcmask 917248
    %710 = vst.msk [vmem:[#allocation5] sm:$0xff] %vm709, %v707
    %711 = vrot.lane.b32.xlu0 %v694, 16
    %v712 = vpop.permute.xlu0 %711
    %vm714 = vcmask 1048448
    %715 = vst.msk [vmem:[#allocation5] sm:$0xff] %vm714, %v712
    // Predicated region
    $region46: #{tpu_custom_call.1} parent=1 // pred_check
      _
    $region47: #{tpu_custom_call.1} parent=1 // pred_check_branch
      %717 = sbr.rel (0) target = $region49
    $region48: #{tpu_custom_call.1} parent=1 // pred_region
      %s719 = ssub.s32 128, 128
      %720 = vsyncadd [#allocation6], %s719
      %s722 = sshll.u32 [#allocation5], 4
      %s723 = int_to_ptr.vmem [resolvable:$true] %s722
      %725 = dma.vmem_to_hbm [thread:$0]  %s723, 128, %s11, [#allocation6]
    $region49: #{tpu_custom_call.1} parent=1 // pred_fallthru
      _
    // Predicated region
    $region50: #{tpu_custom_call.1} parent=1 // pred_check
      _
    $region51: #{tpu_custom_call.1} parent=1 // pred_check_branch
      %727 = sbr.rel (0) target = $region53
    $region52: #{tpu_custom_call.1} parent=1 // pred_region
      %728 = dma.done [#allocation6], 128
    $region53: #{tpu_custom_call.1} parent=1 // pred_fallthru
      _
    %729 = vsyncpa [#allocation6], 1

</llo_original>
